<compile_context>
chip_gen: v5e
topology: v5e:2x2
jax: 0.10.0
libtpu: 0.0.40
codegen_flags: <defaults>
</compile_context>

<pallas_src>
from functools import partial

import jax
import jax.numpy as jnp
from jax import lax
from jax.experimental import pallas as pl
from jax.experimental.pallas import tpu as pltpu

SELU_ALPHA = 1.6732632423543772
SELU_SCALE = 1.0507009873554805
LN_EPS = 1e-5


def _round_up(x, m):
    return (x + m - 1) // m * m


def _selu(x):
    return SELU_SCALE * jnp.where(x > 0, x, SELU_ALPHA * (jnp.exp(x) - 1.0))


def _encode_ln(x, w1, b1, w2, b2):
    """Linear -> SELU -> Linear -> LayerNorm(no affine).

    x/w1/w2 may be bf16 (MXU inputs); accumulation and all elementwise math
    (SELU / LayerNorm) stay in f32.
    """
    h = jnp.dot(x, w1, preferred_element_type=jnp.float32) + b1
    h = _selu(h)
    z = jnp.dot(h.astype(w2.dtype), w2, preferred_element_type=jnp.float32) + b2
    mu = jnp.mean(z, axis=-1, keepdims=True)
    # single-pass variance: E[z^2] - mu^2 (two independent lane reductions)
    var = jnp.maximum(jnp.mean(z * z, axis=-1, keepdims=True) - mu * mu, 0.0)
    return (z - mu) * lax.rsqrt(var + LN_EPS)


def _fs_kernel(x_ref, sel_ref, w1_ref, b1_ref, w2_ref, b2_ref,
               out_ref, acc_ref, *, bp, scale):
    i = pl.program_id(0)

    @pl.when(i == 0)
    def _init():
        acc_ref[...] = jnp.zeros_like(acc_ref)

    # One fused encoder pass over this row tile (query + pos + neg rows all
    # live in the same stacked activation matrix).
    z = _encode_ln(x_ref[...], w1_ref[...], b1_ref[...],
                   w2_ref[...], b2_ref[...])                    # (tr, Dout) f32

    # Query pick-out and signed support-sum as ONE tiny MXU matmul:
    #   sel^T @ z : (tr, 2*Bp)^T x (tr, Dout) -> (2*Bp, Dout)
    tn = (((0,), (0,)), ((), ()))   # contract the row dim of both operands
    acc_ref[...] += lax.dot_general(sel_ref[...], z.astype(sel_ref.dtype), tn,
                                    preferred_element_type=jnp.float32)

    @pl.when(i == pl.num_programs(0) - 1)
    def _finalize():
        acc = acc_ref[...]
        q = acc[:bp]        # encoded query rows            (Bp, Dout)
        d = acc[bp:]        # sum_S(p) - sum_S(n) rows      (Bp, Dout)
        # mean_s<q,p_s> - mean_s<q,n_s> == <q, sum_s p_s - sum_s n_s> / S
        dots = jnp.sum(q * d, axis=-1, keepdims=True)
        out_ref[...] = jax.nn.sigmoid(dots * scale).astype(out_ref.dtype)


def fs_forward(query_mol, p_supp, n_supp, params, *, tile_rows=512,
               compute_dtype=jnp.bfloat16):
    """query_mol: (B, Din), p_supp/n_supp: (B, S, Din)  ->  (B,) predictions."""
    w1, b1, w2, b2 = params
    B, din = query_mol.shape
    _, S, _ = p_supp.shape
    H = w1.shape[1]
    dout = w2.shape[1]
    # 1/sqrt(Din) from the module, 1/S from mean-over-supports (selector holds +-1).
    scale = 1.0 / (S * (din ** 0.5))

    # ---- stack query + positive + negative rows into one activation matrix
    rows = B + 2 * B * S
    tr = _round_up(min(tile_rows, _round_up(rows, 8)), 8)
    rows_pad = _round_up(rows, tr)
    n_tiles = rows_pad // tr
    bp = _round_up(B, 8)            # sublane-aligned batch (padded cols are zero)

    x = jnp.concatenate([
        query_mol.reshape(B, din).astype(jnp.float32),
        p_supp.reshape(B * S, din).astype(jnp.float32),
        n_supp.reshape(B * S, din).astype(jnp.float32),
    ], axis=0)
    if rows_pad != rows:
        x = jnp.pad(x, ((0, rows_pad - rows), (0, 0)))
    x = x.astype(compute_dtype)

    # ---- fused selector, stored transposed: (rows_pad, 2*bp), streamed with
    #      the rows.  Values are only 0 / +1 / -1, exact in bf16.
    r = jnp.arange(rows_pad)
    col = jnp.arange(bp)
    # query picker: row b -> column b (1.0); only true query rows contribute
    selq = ((r[:, None] == col[None, :]) & (r[:, None] < B)).astype(jnp.float32)
    # signed block-diagonal selector: +1 for positive-support rows of batch b,
    # -1 for negative-support rows, 0 for query / padding rows.
    is_p = (r >= B) & (r < B + B * S)
    is_n = (r >= B + B * S) & (r < rows)
    supp_batch = jnp.where(is_p, (r - B) // S, (r - B - B * S) // S)
    sign = is_p.astype(jnp.float32) - is_n.astype(jnp.float32)
    seld = sign[:, None] * (supp_batch[:, None] == col[None, :]).astype(jnp.float32)
    sel = jnp.concatenate([selq, seld], axis=1).astype(compute_dtype)

    # ---- weights (MXU inputs in compute_dtype, biases in f32)
    w1c = w1.astype(compute_dtype)
    w2c = w2.astype(compute_dtype)
    b1_2d = b1.reshape(1, H).astype(jnp.float32)
    b2_2d = b2.reshape(1, dout).astype(jnp.float32)

    def resident(shape):
        return pl.BlockSpec(shape, lambda i: (0,) * len(shape))

    kernel = partial(_fs_kernel, bp=bp, scale=scale)

    out = pl.pallas_call(
        kernel,
        out_shape=jax.ShapeDtypeStruct((bp, 1), jnp.float32),
        grid=(n_tiles,),
        in_specs=[
            pl.BlockSpec((tr, din), lambda i: (i, 0)),      # stacked activations
            pl.BlockSpec((tr, 2 * bp), lambda i: (i, 0)),   # fused selector^T
            resident((din, H)),                             # W1 (resident)
            resident((1, H)),                               # b1
            resident((H, dout)),                            # W2
            resident((1, dout)),                            # b2
        ],
        out_specs=resident((bp, 1)),
        scratch_shapes=[
            pltpu.VMEM((2 * bp, dout), jnp.float32),        # [q_enc ; sum_p - sum_n]
        ],
        compiler_params=pltpu.CompilerParams(
            dimension_semantics=("arbitrary",),   # reduction over row tiles
            vmem_limit_bytes=32 * 1024 * 1024,    # safe on v5e/v6e/v7x
        ),
    )(x, sel, w1c, b1_2d, w2c, b2_2d)
    return out[:B, 0]


def _reference_forward(query_mol, p_supp, n_supp, params):
    """Pure-JAX f32 reference of the torch forward (eval-mode dropout)."""
    w1, b1, w2, b2 = params
    din = query_mol.shape[-1]

    def enc(x):
        h = x @ w1 + b1
        h = SELU_SCALE * jnp.where(h > 0, h, SELU_ALPHA * (jnp.exp(h) - 1.0))
        z = h @ w2 + b2
        mu = jnp.mean(z, axis=-1, keepdims=True)
        var = jnp.mean((z - mu) ** 2, axis=-1, keepdims=True)
        return (z - mu) * lax.rsqrt(var + LN_EPS)

    p = enc(p_supp)
    n = enc(n_supp)
    q = enc(query_mol)[:, None, :]
    q_p = jnp.mean(jnp.sum(q * p, axis=-1), axis=1) / (din ** 0.5)
    q_n = jnp.mean(jnp.sum(q * n, axis=-1), axis=1) / (din ** 0.5)
    return jax.nn.sigmoid(q_p - q_n)


def init_params(key, input_dim, hidden_dim, output_dim):
    """Deterministic init mimicking torch.nn.Linear (uniform +/- 1/sqrt(fan_in))."""
    k1, k2, k3, k4 = jax.random.split(key, 4)
    lim1 = 1.0 / (input_dim ** 0.5)
    lim2 = 1.0 / (hidden_dim ** 0.5)
    w1 = jax.random.uniform(k1, (input_dim, hidden_dim), jnp.float32, -lim1, lim1)
    b1 = jax.random.uniform(k2, (hidden_dim,), jnp.float32, -lim1, lim1)
    w2 = jax.random.uniform(k3, (hidden_dim, output_dim), jnp.float32, -lim2, lim2)
    b2 = jax.random.uniform(k4, (output_dim,), jnp.float32, -lim2, lim2)
    return (w1, b1, w2, b2)


if __name__ == "__main__":
    B, S = 2, 8
    INPUT_DIM, HIDDEN_DIM, OUTPUT_DIM = 32, 32, 16

    key = jax.random.PRNGKey(0)
    kq, kp, kn, kw = jax.random.split(key, 4)
    query_mol = jax.random.normal(kq, (B, INPUT_DIM), jnp.float32)
    p_supp = jax.random.normal(kp, (B, S, INPUT_DIM), jnp.float32)
    n_supp = jax.random.normal(kn, (B, S, INPUT_DIM), jnp.float32)
    params = init_params(kw, INPUT_DIM, HIDDEN_DIM, OUTPUT_DIM)

    ref = _reference_forward(query_mol, p_supp, n_supp, params)

    # f32 path with a small row tile (forces multiple grid steps) to exercise
    # the tiled accumulation / pl.when init-finalize structure.
    pred_f32 = fs_forward(query_mol, p_supp, n_supp, params,
                          tile_rows=16, compute_dtype=jnp.float32)
    pred_f32 = jax.block_until_ready(pred_f32)
    assert pred_f32.shape == (B,)
    assert jnp.allclose(pred_f32, ref, atol=1e-4, rtol=1e-4), (pred_f32, ref)

    # default path: bf16 MXU inputs, single resident tile at these tiny shapes.
    pred_bf16 = fs_forward(query_mol, p_supp, n_supp, params)
    pred_bf16 = jax.block_until_ready(pred_bf16)
    assert pred_bf16.shape == (B,)
    assert jnp.allclose(pred_bf16, ref, atol=2.5e-2), (pred_bf16, ref)

    print("KERNEL_OK")
</pallas_src>

<mosaic_0001>
module attributes {stable_mosaic.version = 11 : i64} {
  func.func @_fs_kernel(%arg0: i32, %arg1: memref<16x32xf32, #tpu.memory_space<vmem>>, %arg2: memref<16x16xf32, #tpu.memory_space<vmem>>, %arg3: memref<32x32xf32, #tpu.memory_space<vmem>>, %arg4: memref<1x32xf32, #tpu.memory_space<vmem>>, %arg5: memref<32x16xf32, #tpu.memory_space<vmem>>, %arg6: memref<1x16xf32, #tpu.memory_space<vmem>>, %arg7: memref<8x1xf32, #tpu.memory_space<vmem>>, %arg8: memref<16x16xf32, #tpu.memory_space<vmem>>) attributes {dimension_semantics = [#tpu.dimension_semantics<arbitrary>], iteration_bounds = array<i64: 3>, scalar_prefetch = 0 : i64, scratch_operands = 1 : i64, tpu.core_type = #tpu.core_type<tc>, window_params = [{transform_indices = @transform_0, window_bounds = array<i64: 16, 32>}, {transform_indices = @transform_1, window_bounds = array<i64: 16, 16>}, {pipeline_mode = #tpu.pipeline_mode<synchronous>, transform_indices = @transform_2, window_bounds = array<i64: 32, 32>}, {pipeline_mode = #tpu.pipeline_mode<synchronous>, transform_indices = @transform_3, window_bounds = array<i64: 1, 32>}, {pipeline_mode = #tpu.pipeline_mode<synchronous>, transform_indices = @transform_4, window_bounds = array<i64: 32, 16>}, {pipeline_mode = #tpu.pipeline_mode<synchronous>, transform_indices = @transform_5, window_bounds = array<i64: 1, 16>}, {pipeline_mode = #tpu.pipeline_mode<synchronous>, transform_indices = @transform_6, window_bounds = array<i64: 8, 1>}]} {
    %c0_i32 = arith.constant 0 : i32
    %0 = arith.cmpi eq, %arg0, %c0_i32 : i32
    %1 = arith.extui %0 : i1 to i32
    %c0_i32_0 = arith.constant 0 : i32
    %2 = arith.cmpi ne, %1, %c0_i32_0 : i32
    scf.if %2 {
      %cst_29 = arith.constant 0.000000e+00 : f32
      %52 = vector.broadcast %cst_29 : f32 to vector<16x16xf32>
      %c0_30 = arith.constant 0 : index
      %c0_31 = arith.constant 0 : index
      %53 = vector.load %arg8[%c0_30, %c0_31] : memref<16x16xf32, #tpu.memory_space<vmem>>, vector<16x16xf32>
      tpu.vector_store %arg8[%c0_30, %c0_31], %52 {strides = array<i32>} : memref<16x16xf32, #tpu.memory_space<vmem>>, vector<16x16xf32>,
    } else {
    }
    %c0 = arith.constant 0 : index
    %c0_1 = arith.constant 0 : index
    %3 = vector.load %arg1[%c0, %c0_1] : memref<16x32xf32, #tpu.memory_space<vmem>>, vector<16x32xf32>
    %c0_2 = arith.constant 0 : index
    %c0_3 = arith.constant 0 : index
    %4 = vector.load %arg3[%c0_2, %c0_3] : memref<32x32xf32, #tpu.memory_space<vmem>>, vector<32x32xf32>
    %c0_4 = arith.constant 0 : index
    %c0_5 = arith.constant 0 : index
    %5 = vector.load %arg4[%c0_4, %c0_5] : memref<1x32xf32, #tpu.memory_space<vmem>>, vector<1x32xf32>
    %c0_6 = arith.constant 0 : index
    %c0_7 = arith.constant 0 : index
    %6 = vector.load %arg5[%c0_6, %c0_7] : memref<32x16xf32, #tpu.memory_space<vmem>>, vector<32x16xf32>
    %c0_8 = arith.constant 0 : index
    %c0_9 = arith.constant 0 : index
    %7 = vector.load %arg6[%c0_8, %c0_9] : memref<1x16xf32, #tpu.memory_space<vmem>>, vector<1x16xf32>
    %cst = arith.constant dense<0.000000e+00> : vector<16x32xf32>
    %8 = tpu.matmul %3, %4, %cst {dimension_numbers = #tpu.dot_dimension_numbers<[1], [0], [0], [1], [0, 0, 1, 1], [], []>} : vector<16x32xf32>, vector<32x32xf32>, vector<16x32xf32> -> vector<16x32xf32>
    %9 = vector.broadcast %5 : vector<1x32xf32> to vector<16x32xf32>
    %10 = arith.addf %8, %9 : vector<16x32xf32>
    %cst_10 = arith.constant 0.000000e+00 : f32
    %11 = vector.broadcast %cst_10 : f32 to vector<16x32xf32>
    %12 = arith.cmpf ogt, %10, %11 : vector<16x32xf32>
    %13 = math.exp %10 : vector<16x32xf32>
    %cst_11 = arith.constant 1.000000e+00 : f32
    %14 = vector.broadcast %cst_11 : f32 to vector<16x32xf32>
    %15 = arith.subf %13, %14 : vector<16x32xf32>
    %cst_12 = arith.constant 1.67326319 : f32
    %16 = vector.broadcast %cst_12 : f32 to vector<16x32xf32>
    %17 = arith.mulf %16, %15 : vector<16x32xf32>
    %18 = arith.select %12, %10, %17 : vector<16x32xi1>, vector<16x32xf32>
    %cst_13 = arith.constant 1.05070102 : f32
    %19 = vector.broadcast %cst_13 : f32 to vector<16x32xf32>
    %20 = arith.mulf %19, %18 : vector<16x32xf32>
    %cst_14 = arith.constant dense<0.000000e+00> : vector<16x16xf32>
    %21 = tpu.matmul %20, %6, %cst_14 {dimension_numbers = #tpu.dot_dimension_numbers<[1], [0], [0], [1], [0, 0, 1, 1], [], []>} : vector<16x32xf32>, vector<32x16xf32>, vector<16x16xf32> -> vector<16x16xf32>
    %22 = vector.broadcast %7 : vector<1x16xf32> to vector<16x16xf32>
    %23 = arith.addf %21, %22 : vector<16x16xf32>
    %cst_15 = arith.constant dense<0.000000e+00> : vector<16xf32>
    %24 = vector.multi_reduction <add>, %23, %cst_15 [1] : vector<16x16xf32> to vector<16xf32>
    %25 = vector.shape_cast %24 : vector<16xf32> to vector<16x1xf32>
    %cst_16 = arith.constant 1.600000e+01 : f32
    %26 = vector.broadcast %cst_16 : f32 to vector<16x1xf32>
    %27 = arith.divf %25, %26 : vector<16x1xf32>
    %28 = arith.mulf %23, %23 : vector<16x16xf32>
    %cst_17 = arith.constant dense<0.000000e+00> : vector<16xf32>
    %29 = vector.multi_reduction <add>, %28, %cst_17 [1] : vector<16x16xf32> to vector<16xf32>
    %30 = vector.shape_cast %29 : vector<16xf32> to vector<16x1xf32>
    %cst_18 = arith.constant 1.600000e+01 : f32
    %31 = vector.broadcast %cst_18 : f32 to vector<16x1xf32>
    %32 = arith.divf %30, %31 : vector<16x1xf32>
    %33 = arith.mulf %27, %27 : vector<16x1xf32>
    %34 = arith.subf %32, %33 : vector<16x1xf32>
    %cst_19 = arith.constant 0.000000e+00 : f32
    %35 = vector.broadcast %cst_19 : f32 to vector<16x1xf32>
    %36 = arith.maximumf %34, %35 : vector<16x1xf32>
    %37 = vector.broadcast %27 : vector<16x1xf32> to vector<16x16xf32>
    %38 = arith.subf %23, %37 : vector<16x16xf32>
    %cst_20 = arith.constant 9.99999974E-6 : f32
    %39 = vector.broadcast %cst_20 : f32 to vector<16x1xf32>
    %40 = arith.addf %36, %39 : vector<16x1xf32>
    %41 = math.rsqrt %40 : vector<16x1xf32>
    %42 = vector.broadcast %41 : vector<16x1xf32> to vector<16x16xf32>
    %43 = arith.mulf %38, %42 : vector<16x16xf32>
    %c0_21 = arith.constant 0 : index
    %c0_22 = arith.constant 0 : index
    %44 = vector.load %arg8[%c0_21, %c0_22] : memref<16x16xf32, #tpu.memory_space<vmem>>, vector<16x16xf32>
    %c0_23 = arith.constant 0 : index
    %c0_24 = arith.constant 0 : index
    %45 = vector.load %arg2[%c0_23, %c0_24] : memref<16x16xf32, #tpu.memory_space<vmem>>, vector<16x16xf32>
    %cst_25 = arith.constant dense<0.000000e+00> : vector<16x16xf32>
    %46 = tpu.matmul %45, %43, %cst_25 {dimension_numbers = #tpu.dot_dimension_numbers<[0], [0], [1], [1], [0, 1, 1, 1], [], []>} : vector<16x16xf32>, vector<16x16xf32>, vector<16x16xf32> -> vector<16x16xf32>
    %47 = arith.addf %44, %46 : vector<16x16xf32>
    %c0_26 = arith.constant 0 : index
    %c0_27 = arith.constant 0 : index
    %48 = vector.load %arg8[%c0_26, %c0_27] : memref<16x16xf32, #tpu.memory_space<vmem>>, vector<16x16xf32>
    tpu.vector_store %arg8[%c0_26, %c0_27], %47 {strides = array<i32>} : memref<16x16xf32, #tpu.memory_space<vmem>>, vector<16x16xf32>,
    %c2_i32 = arith.constant 2 : i32
    %49 = arith.cmpi eq, %arg0, %c2_i32 : i32
    %50 = arith.extui %49 : i1 to i32
    %c0_i32_28 = arith.constant 0 : i32
    %51 = arith.cmpi ne, %50, %c0_i32_28 : i32
    scf.if %51 {
      %c0_29 = arith.constant 0 : index
      %c0_30 = arith.constant 0 : index
      %52 = vector.load %arg8[%c0_29, %c0_30] : memref<16x16xf32, #tpu.memory_space<vmem>>, vector<16x16xf32>
      %53 = vector.extract_strided_slice %52 {offsets = [0, 0], sizes = [8, 16], strides = [1, 1]} : vector<16x16xf32> to vector<8x16xf32>
      %54 = vector.extract_strided_slice %52 {offsets = [8, 0], sizes = [8, 16], strides = [1, 1]} : vector<16x16xf32> to vector<8x16xf32>
      %55 = arith.mulf %53, %54 : vector<8x16xf32>
      %cst_31 = arith.constant dense<0.000000e+00> : vector<8xf32>
      %56 = vector.multi_reduction <add>, %55, %cst_31 [1] : vector<8x16xf32> to vector<8xf32>
      %57 = vector.shape_cast %56 : vector<8xf32> to vector<8x1xf32>
      %cst_32 = arith.constant 0.0220970865 : f32
      %58 = vector.broadcast %cst_32 : f32 to vector<8x1xf32>
      %59 = arith.mulf %57, %58 : vector<8x1xf32>
      %60 = arith.negf %59 : vector<8x1xf32>
      %61 = math.exp %60 : vector<8x1xf32>
      %cst_33 = arith.constant 1.000000e+00 : f32
      %62 = vector.broadcast %cst_33 : f32 to vector<8x1xf32>
      %63 = arith.addf %62, %61 : vector<8x1xf32>
      %64 = arith.divf %62, %63 : vector<8x1xf32>
      %c0_34 = arith.constant 0 : index
      %c0_35 = arith.constant 0 : index
      %65 = vector.load %arg7[%c0_34, %c0_35] : memref<8x1xf32, #tpu.memory_space<vmem>>, vector<8x1xf32>
      tpu.vector_store %arg7[%c0_34, %c0_35], %64 {strides = array<i32>} : memref<8x1xf32, #tpu.memory_space<vmem>>, vector<8x1xf32>,
    } else {
    }
    return
  }
  func.func @transform_0(%arg0: i32) -> (i32, i32) {
    %c0_i32 = arith.constant 0 : i32
    %c0_i32_0 = arith.constant 0 : i32
    return %arg0, %c0_i32 : i32, i32
  }
  func.func @transform_1(%arg0: i32) -> (i32, i32) {
    %c0_i32 = arith.constant 0 : i32
    %c0_i32_0 = arith.constant 0 : i32
    return %arg0, %c0_i32 : i32, i32
  }
  func.func @transform_2(%arg0: i32) -> (i32, i32) {
    %c0_i32 = arith.constant 0 : i32
    %c0_i32_0 = arith.constant 0 : i32
    %c0_i32_1 = arith.constant 0 : i32
    return %c0_i32, %c0_i32_0 : i32, i32
  }
  func.func @transform_3(%arg0: i32) -> (i32, i32) {
    %c0_i32 = arith.constant 0 : i32
    %c0_i32_0 = arith.constant 0 : i32
    %c0_i32_1 = arith.constant 0 : i32
    return %c0_i32, %c0_i32_0 : i32, i32
  }
  func.func @transform_4(%arg0: i32) -> (i32, i32) {
    %c0_i32 = arith.constant 0 : i32
    %c0_i32_0 = arith.constant 0 : i32
    %c0_i32_1 = arith.constant 0 : i32
    return %c0_i32, %c0_i32_0 : i32, i32
  }
  func.func @transform_5(%arg0: i32) -> (i32, i32) {
    %c0_i32 = arith.constant 0 : i32
    %c0_i32_0 = arith.constant 0 : i32
    %c0_i32_1 = arith.constant 0 : i32
    return %c0_i32, %c0_i32_0 : i32, i32
  }
  func.func @transform_6(%arg0: i32) -> (i32, i32) {
    %c0_i32 = arith.constant 0 : i32
    %c0_i32_0 = arith.constant 0 : i32
    %c0_i32_1 = arith.constant 0 : i32
    return %c0_i32, %c0_i32_0 : i32, i32
  }
}

</mosaic_0001>

<llo_original>
// kernel: tpu_custom_call.1
$region0: #{tpu_custom_call.1}
  #allocation0 [shape = 'u32[]', space=smem, size = 0x4, offset = 0x4, fixed_abs, tag = 'smem constant byte address 0x4 - core index']
  #allocation1 [shape = 'u32[72,128]{1,0:T(1,128)}', space=vmem, size = 0x9000, scoped, tag = 'internal scratch']
  #allocation2 [shape = 'f32[16,16]{1,0:T(8,128)}', space=vmem, size = 0x2000, scoped, tag = 'scratch operand']
  %s0 = inlined_call_operand.vmem [shape: f32[48,32], index: 0, kind: input, shape index: {}]
  %s1 = inlined_call_operand.vmem [shape: f32[48,16], index: 1, kind: input, shape index: {}]
  %s2 = inlined_call_operand.vmem [shape: f32[32,32], index: 2, kind: input, shape index: {}]
  %s3 = inlined_call_operand.vmem [shape: f32[1,32], index: 3, kind: input, shape index: {}]
  %s4 = inlined_call_operand.vmem [shape: f32[32,16], index: 4, kind: input, shape index: {}]
  %s5 = inlined_call_operand.vmem [shape: f32[1,16], index: 5, kind: input, shape index: {}]
  %s6 = inlined_call_operand.vmem [shape: f32[8,1], index: 6, kind: output, shape index: {}]
  %s7 = sld [smem:[#allocation0]]
  $region65: #{tpu_custom_call.1} parent=0
    _
  %s9 = ssub.s32 1, %s7
  %s10 = scalar_select 0, %s9, %s7
  loop: start=0, step=1, limit=5
  $region2: #{tpu_custom_call.1} parent=0 // loop_pre_header
    _
  $region3: #{tpu_custom_call.1} parent=0 // loop_header
    %s12 = sphi 0, %s16
    %p13 = scmp.ge.s32.totalorder %s12, 5
    %s22 = sphi 0, %s24
    %s25 = sphi 0, %s22
    %s26 = sphi 0, %s25
    %s42 = sphi 0, %s26
    %s48 = sphi 0, %s50
    %s51 = sphi 0, %s48
    %s52 = sphi 0, %s51
    %s68 = sphi 0, %s52
    %s72 = sphi 0, %s72
    %s74 = sphi 0, %s72
    %s75 = sphi 0, %s74
    %s89 = sphi 0, %s75
    %s93 = sphi 0, %s93
    %s95 = sphi 0, %s93
    %s96 = sphi 0, %s95
    %s110 = sphi 0, %s96
    %s114 = sphi 0, %s114
    %s116 = sphi 0, %s114
    %s117 = sphi 0, %s116
    %s131 = sphi 0, %s117
    %s135 = sphi 0, %s135
    %s137 = sphi 0, %s135
    %s138 = sphi 0, %s137
    %s152 = sphi 0, %s138
    %s156 = sphi 0, %s156
    %s158 = sphi 0, %s156
    %s159 = sphi 0, %s158
    %s173 = sphi 0, %s159
  $region4: #{tpu_custom_call.1} parent=0 // loop_header_branch
    %15 = sbr.rel (%p13) target = $region8
  $region5: #{tpu_custom_call.1} parent=0 // loop_body
    %s17 = ssub.s32 %s12, 1
    %s18 = ssub.s32 %s12, 2
    %s19 = sadd.s32 %s12, 1
    %s20 = ssub.s32 %s12, %s19
    %p21 = scmp.eq.s32.totalorder %s20, 0
    %s23 = sadd.s32 %s22, 1
    %s24 = scalar_select %p21, %s22, %s23
    %p27 = pneg %p21
    %p28 = scmp.eq.s32.totalorder %s12, 2
    %p29 = por %p27, %p28
    %p30 = scmp.ne.s32.totalorder %s22, %s25
    %p31 = scmp.eq.s32.totalorder %s12, 0
    %p32 = por %p30, %p31
    %p33 = scmp.ne.s32.totalorder %s22, %s25
    %p34 = scmp.eq.s32.totalorder %s17, 2
    %p35 = por %p33, %p34
    %p36 = scmp.ne.s32.totalorder %s25, %s26
    %p37 = scmp.eq.s32.totalorder %s17, 0
    %p38 = por %p36, %p37
    %p39 = scmp.ne.s32.totalorder %s25, %s26
    %p40 = scmp.eq.s32.totalorder %s18, 2
    %p41 = por %p39, %p40
    %p43 = scmp.ne.s32.totalorder %s26, %s42
    %p44 = scmp.eq.s32.totalorder %s18, 0
    %p45 = por %p43, %p44
    %s46 = ssub.s32 %s12, %s19
    %p47 = scmp.eq.s32.totalorder %s46, 0
    %s49 = sadd.s32 %s48, 1
    %s50 = scalar_select %p47, %s48, %s49
    %p53 = pneg %p47
    %p54 = scmp.eq.s32.totalorder %s12, 2
    %p55 = por %p53, %p54
    %p56 = scmp.ne.s32.totalorder %s48, %s51
    %p57 = scmp.eq.s32.totalorder %s12, 0
    %p58 = por %p56, %p57
    %p59 = scmp.ne.s32.totalorder %s48, %s51
    %p60 = scmp.eq.s32.totalorder %s17, 2
    %p61 = por %p59, %p60
    %p62 = scmp.ne.s32.totalorder %s51, %s52
    %p63 = scmp.eq.s32.totalorder %s17, 0
    %p64 = por %p62, %p63
    %p65 = scmp.ne.s32.totalorder %s51, %s52
    %p66 = scmp.eq.s32.totalorder %s18, 2
    %p67 = por %p65, %p66
    %p69 = scmp.ne.s32.totalorder %s52, %s68
    %p70 = scmp.eq.s32.totalorder %s18, 0
    %p71 = por %p69, %p70
    %s73 = sadd.s32 %s72, 1
    %p76 = scmp.eq.s32.totalorder %s12, 2
    %p77 = scmp.ne.s32.totalorder %s72, %s74
    %p78 = scmp.eq.s32.totalorder %s12, 0
    %p79 = por %p77, %p78
    %p80 = scmp.ne.s32.totalorder %s72, %s74
    %p81 = scmp.eq.s32.totalorder %s17, 2
    %p82 = por %p80, %p81
    %p83 = scmp.ne.s32.totalorder %s74, %s75
    %p84 = scmp.eq.s32.totalorder %s17, 0
    %p85 = por %p83, %p84
    %p86 = scmp.ne.s32.totalorder %s74, %s75
    %p87 = scmp.eq.s32.totalorder %s18, 2
    %p88 = por %p86, %p87
    %p90 = scmp.ne.s32.totalorder %s75, %s89
    %p91 = scmp.eq.s32.totalorder %s18, 0
    %p92 = por %p90, %p91
    %s94 = sadd.s32 %s93, 1
    %p97 = scmp.eq.s32.totalorder %s12, 2
    %p98 = scmp.ne.s32.totalorder %s93, %s95
    %p99 = scmp.eq.s32.totalorder %s12, 0
    %p100 = por %p98, %p99
    %p101 = scmp.ne.s32.totalorder %s93, %s95
    %p102 = scmp.eq.s32.totalorder %s17, 2
    %p103 = por %p101, %p102
    %p104 = scmp.ne.s32.totalorder %s95, %s96
    %p105 = scmp.eq.s32.totalorder %s17, 0
    %p106 = por %p104, %p105
    %p107 = scmp.ne.s32.totalorder %s95, %s96
    %p108 = scmp.eq.s32.totalorder %s18, 2
    %p109 = por %p107, %p108
    %p111 = scmp.ne.s32.totalorder %s96, %s110
    %p112 = scmp.eq.s32.totalorder %s18, 0
    %p113 = por %p111, %p112
    %s115 = sadd.s32 %s114, 1
    %p118 = scmp.eq.s32.totalorder %s12, 2
    %p119 = scmp.ne.s32.totalorder %s114, %s116
    %p120 = scmp.eq.s32.totalorder %s12, 0
    %p121 = por %p119, %p120
    %p122 = scmp.ne.s32.totalorder %s114, %s116
    %p123 = scmp.eq.s32.totalorder %s17, 2
    %p124 = por %p122, %p123
    %p125 = scmp.ne.s32.totalorder %s116, %s117
    %p126 = scmp.eq.s32.totalorder %s17, 0
    %p127 = por %p125, %p126
    %p128 = scmp.ne.s32.totalorder %s116, %s117
    %p129 = scmp.eq.s32.totalorder %s18, 2
    %p130 = por %p128, %p129
    %p132 = scmp.ne.s32.totalorder %s117, %s131
    %p133 = scmp.eq.s32.totalorder %s18, 0
    %p134 = por %p132, %p133
    %s136 = sadd.s32 %s135, 1
    %p139 = scmp.eq.s32.totalorder %s12, 2
    %p140 = scmp.ne.s32.totalorder %s135, %s137
    %p141 = scmp.eq.s32.totalorder %s12, 0
    %p142 = por %p140, %p141
    %p143 = scmp.ne.s32.totalorder %s135, %s137
    %p144 = scmp.eq.s32.totalorder %s17, 2
    %p145 = por %p143, %p144
    %p146 = scmp.ne.s32.totalorder %s137, %s138
    %p147 = scmp.eq.s32.totalorder %s17, 0
    %p148 = por %p146, %p147
    %p149 = scmp.ne.s32.totalorder %s137, %s138
    %p150 = scmp.eq.s32.totalorder %s18, 2
    %p151 = por %p149, %p150
    %p153 = scmp.ne.s32.totalorder %s138, %s152
    %p154 = scmp.eq.s32.totalorder %s18, 0
    %p155 = por %p153, %p154
    %s157 = sadd.s32 %s156, 1
    %p160 = scmp.eq.s32.totalorder %s12, 2
    %p161 = scmp.ne.s32.totalorder %s156, %s158
    %p162 = scmp.eq.s32.totalorder %s12, 0
    %p163 = por %p161, %p162
    %p164 = scmp.ne.s32.totalorder %s156, %s158
    %p165 = scmp.eq.s32.totalorder %s17, 2
    %p166 = por %p164, %p165
    %p167 = scmp.ne.s32.totalorder %s158, %s159
    %p168 = scmp.eq.s32.totalorder %s17, 0
    %p169 = por %p167, %p168
    %p170 = scmp.ne.s32.totalorder %s158, %s159
    %p171 = scmp.eq.s32.totalorder %s18, 2
    %p172 = por %p170, %p171
    %p174 = scmp.ne.s32.totalorder %s159, %s173
    %p175 = scmp.eq.s32.totalorder %s18, 0
    %p176 = por %p174, %p175
    %p177 = scmp.le.s32.totalorder 1, %s12
    %p178 = scmp.lt.s32.totalorder %s12, 4
    %p179 = pnand %p177, %p178
    %p180 = pneg %p179
    // Predicated region
    $region9: #{tpu_custom_call.1} parent=5 // pred_check
      _
    $region10: #{tpu_custom_call.1} parent=5 // pred_check_branch
      %182 = sbr.rel (%p179) target = $region12
    $region11: #{tpu_custom_call.1} parent=5 // pred_region
      %s183 = ssub.s32 %s12, 1
      // Predicated region
      $region13: #{tpu_custom_call.1} parent=11 // pred_check
        %p184 = pneg %p85
      $region14: #{tpu_custom_call.1} parent=11 // pred_check_branch
        %186 = sbr.rel (%p184) target = $region16
      $region15: #{tpu_custom_call.1} parent=11 // pred_region
        _
      $region16: #{tpu_custom_call.1} parent=11 // pred_fallthru
        _
      // Predicated region
      $region17: #{tpu_custom_call.1} parent=11 // pred_check
        %p187 = pneg %p106
      $region18: #{tpu_custom_call.1} parent=11 // pred_check_branch
        %189 = sbr.rel (%p187) target = $region20
      $region19: #{tpu_custom_call.1} parent=11 // pred_region
        _
      $region20: #{tpu_custom_call.1} parent=11 // pred_fallthru
        _
      // Predicated region
      $region21: #{tpu_custom_call.1} parent=11 // pred_check
        %p190 = pneg %p127
      $region22: #{tpu_custom_call.1} parent=11 // pred_check_branch
        %192 = sbr.rel (%p190) target = $region24
      $region23: #{tpu_custom_call.1} parent=11 // pred_region
        _
      $region24: #{tpu_custom_call.1} parent=11 // pred_fallthru
        _
      // Predicated region
      $region25: #{tpu_custom_call.1} parent=11 // pred_check
        %p193 = pneg %p148
      $region26: #{tpu_custom_call.1} parent=11 // pred_check_branch
        %195 = sbr.rel (%p193) target = $region28
      $region27: #{tpu_custom_call.1} parent=11 // pred_region
        _
      $region28: #{tpu_custom_call.1} parent=11 // pred_fallthru
        _
    $region12: #{tpu_custom_call.1} parent=5 // pred_fallthru
      _
    %p196 = scmp.lt.s32.totalorder %s12, 3
    // Predicated region
    $region29: #{tpu_custom_call.1} parent=5 // pred_check
      %p197 = pneg %p196
    $region30: #{tpu_custom_call.1} parent=5 // pred_check_branch
      %199 = sbr.rel (%p197) target = $region32
    $region31: #{tpu_custom_call.1} parent=5 // pred_region
      // Predicated region
      $region33: #{tpu_custom_call.1} parent=31 // pred_check
        %p200 = pneg %p32
      $region34: #{tpu_custom_call.1} parent=31 // pred_check_branch
        %202 = sbr.rel (%p200) target = $region36
      $region35: #{tpu_custom_call.1} parent=31 // pred_region
        %s203 = smul.u32 2, %s12
        %p204 = scmp.lt.s32.totalorder %s203, 5
        %s205 = scalar_select %p204, %s203, 5
        %s206 = smul.addr %s205, 8
        %s207 = scalar_lea.vmem %s0, %s206
        %s208 = smul.u32 2, %s12
      $region36: #{tpu_custom_call.1} parent=31 // pred_fallthru
        _
      // Predicated region
      $region37: #{tpu_custom_call.1} parent=31 // pred_check
        %p209 = pneg %p58
      $region38: #{tpu_custom_call.1} parent=31 // pred_check_branch
        %211 = sbr.rel (%p209) target = $region40
      $region39: #{tpu_custom_call.1} parent=31 // pred_region
        %s212 = smul.u32 2, %s12
        %p213 = scmp.lt.s32.totalorder %s212, 5
        %s214 = scalar_select %p213, %s212, 5
        %s215 = smul.addr %s214, 8
        %s216 = scalar_lea.vmem %s1, %s215
        %s217 = smul.u32 2, %s12
      $region40: #{tpu_custom_call.1} parent=31 // pred_fallthru
        _
    $region32: #{tpu_custom_call.1} parent=5 // pred_fallthru
      _
    %p218 = scmp.le.s32.totalorder 1, %s12
    %p219 = scmp.lt.s32.totalorder %s12, 4
    %p220 = pnand %p218, %p219
    %p221 = pneg %p220
    // Predicated region
    $region41: #{tpu_custom_call.1} parent=5 // pred_check
      _
    $region42: #{tpu_custom_call.1} parent=5 // pred_check_branch
      %223 = sbr.rel (%p220) target = $region44
    $region43: #{tpu_custom_call.1} parent=5 // pred_region
      %s224 = ssub.s32 %s12, 1
      %s225 = smul.u32 2, %s17
      %p226 = scmp.lt.s32.totalorder %s225, 5
      %s227 = scalar_select %p226, %s225, 5
      %s228 = smul.addr %s227, 8
      %s229 = scalar_lea.vmem %s0, %s228
      %p230 = pneg %p38
      %p231 = pneg %p35
      %s232 = smul.u32 2, %s17
      %p233 = scmp.lt.s32.totalorder %s232, 5
      %s234 = scalar_select %p233, %s232, 5
      %s235 = smul.addr %s234, 8
      %s236 = scalar_lea.vmem %s1, %s235
      %p237 = pneg %p64
      %p238 = pneg %p61
      %p239 = pneg %p85
      %p240 = pneg %p82
      %p241 = pneg %p106
      %p242 = pneg %p103
      %p243 = pneg %p127
      %p244 = pneg %p124
      %p245 = pneg %p148
      %p246 = pneg %p145
      %p247 = pneg %p169
      %p248 = pneg %p166
      %s249 = smul.u32 2, %s17
      %p250 = scmp.lt.s32.totalorder %s249, 5
      %s251 = scalar_select %p250, %s249, 5
      %s252 = smul.addr %s251, 8
      %s253 = scalar_lea.vmem %s0, %s252
      %s254 = smul.u32 2, %s17
      %s255 = smul.u32 2, %s17
      %p256 = scmp.lt.s32.totalorder %s255, 5
      %s257 = scalar_select %p256, %s255, 5
      %s258 = smul.addr %s257, 8
      %s259 = scalar_lea.vmem %s1, %s258
      %s260 = smul.u32 2, %s17
      %p261 = scmp.eq.s32.totalorder %s17, 0
      // Predicated region
      $region45: #{tpu_custom_call.1} parent=43 // pred_check
        %p262 = pneg %p261
      $region46: #{tpu_custom_call.1} parent=43 // pred_check_branch
        %264 = sbr.rel (%p262) target = $region48
      $region47: #{tpu_custom_call.1} parent=43 // pred_region
        %vm265 = vcmask 130048
        %266 = vst.msk [vmem:[#allocation2] sm:$0xff] %vm265, 0.0
        %267 = vst.msk [vmem:[#allocation2 + $0x8] sm:$0xff] %vm265, 0.0
      $region48: #{tpu_custom_call.1} parent=43 // pred_fallthru
        _
      %v268 = vld [vmem:[%s253] sm:$0xff]
      %v269 = vld [vmem:[%s253 + $0x8] sm:$0xff]
      %v270 = vld [vmem:[%s2] sm:$0xff]
      %v271 = vld [vmem:[%s2 + $0x8] sm:$0xff]
      %v272 = vld [vmem:[%s2 + $0x10] sm:$0xff]
      %v273 = vld [vmem:[%s2 + $0x18] sm:$0xff]
      %v274 = vld [vmem:[%s3] sm:$0x1]
      %v275 = vld [vmem:[%s4] sm:$0xff]
      %v276 = vld [vmem:[%s4 + $0x8] sm:$0xff]
      %v277 = vld [vmem:[%s4 + $0x10] sm:$0xff]
      %v278 = vld [vmem:[%s4 + $0x18] sm:$0xff]
      %v279 = vld [vmem:[%s5] sm:$0x1]
      %v281 = vperm.slane %v274, 0
      %vm283 = vcmask 261120
      %v285 = vsel %vm283, %v268, 0
      %v288 = vsel %vm283, %v269, 0
      %290 = vmatpush.msra.mxu0 0.0
      %291 = vmatpush.msra.mxu0 0.0
      %292 = vmatpush.msra.mxu0 0.0
      %293 = vmatpush.msra.mxu0 0.0
      %294 = vmatpush.msra.mxu0 0.0
      %295 = vmatpush.msra.mxu0 0.0
      %296 = vmatpush.msra.mxu0 0.0
      %297 = vmatpush.msra.mxu0 0.0
      %298 = vmatpush.msra.mxu0 0.0
      %299 = vmatpush.msra.mxu0 0.0
      %300 = vmatpush.msra.mxu0 0.0
      %301 = vmatpush.msra.mxu0 0.0
      %302 = vmatpush.msra.mxu0 %v273
      %303 = vmatpush.msra.mxu0 %v272
      %304 = vmatpush.msra.mxu0 %v271
      %305 = vmatpush.msra.mxu0 %v270
      %306 = vmatmul.f32.gmra.mxu0 %v285
      %v307 = vpop.f32.mrf.mxu0
      %v308 = vadd.f32 %v281, %v307
      %309 = vmatmul.f32.gmra.mxu0 %v288
      %v310 = vpop.f32.mrf.mxu0
      %v311 = vadd.f32 %v281, %v310
      %312 = vdwg.mxu0
      %vm313 = vcmp.gt.f32.partialorder %v308, 0.0
      %vm314 = vcmp.gt.f32.partialorder %v311, 0.0
      %v315 = vmul.f32 %v308, 1.442695
      %v316 = vpow.pop %v315
      %v317 = vmul.f32 %v311, 1.442695
      %v318 = vpow.pop %v317
      %v319 = vsub.f32 %v316, 1.0
      %v320 = vsub.f32 %v318, 1.0
      %v321 = vmul.f32 %v319, 1.6732632
      %v322 = vmul.f32 %v320, 1.6732632
      %v323 = vsel %vm313, %v308, %v321
      %v324 = vsel %vm314, %v311, %v322
      %v325 = vmul.f32 %v323, 1.050701
      %v326 = vmul.f32 %v324, 1.050701
      %v328 = vperm.slane %v279, 0
      %v331 = vsel %vm283, %v325, 0
      %v334 = vsel %vm283, %v326, 0
      %336 = vmatpush.msra.mxu0 0.0
      %337 = vmatpush.msra.mxu0 0.0
      %338 = vmatpush.msra.mxu0 0.0
      %339 = vmatpush.msra.mxu0 0.0
      %340 = vmatpush.msra.mxu0 0.0
      %341 = vmatpush.msra.mxu0 0.0
      %342 = vmatpush.msra.mxu0 0.0
      %343 = vmatpush.msra.mxu0 0.0
      %344 = vmatpush.msra.mxu0 0.0
      %345 = vmatpush.msra.mxu0 0.0
      %346 = vmatpush.msra.mxu0 0.0
      %347 = vmatpush.msra.mxu0 0.0
      %348 = vmatpush.msra.mxu0 %v278
      %349 = vmatpush.msra.mxu0 %v277
      %350 = vmatpush.msra.mxu0 %v276
      %351 = vmatpush.msra.mxu0 %v275
      %352 = vmatmul.f32.gmra.mxu0 %v331
      %v353 = vpop.f32.mrf.mxu0
      %v354 = vadd.f32 %v328, %v353
      %355 = vmatmul.f32.gmra.mxu0 %v334
      %v356 = vpop.f32.mrf.mxu0
      %v357 = vadd.f32 %v328, %v356
      %358 = vdwg.mxu0
      %vm359 = vcmask 130048
      %v360 = vsel %vm359, %v354, 0.0
      %361 = vadd.xlane.f32.xlu0 %v360
      %v362 = vpop.xlane.xlu0 %361
      %v363 = vsel %vm359, %v357, 0.0
      %364 = vadd.xlane.f32.xlu0 %v363
      %v365 = vpop.xlane.xlu0 %364
      %v366 = vrcp.pop 16.0
      %v367 = vmul.f32 16.0, %v366
      %v368 = vsub.f32 1.0, %v367
      %v369 = vmul.f32 %v366, %v368
      %v370 = vadd.f32 %v366, %v369
      %vm371 = vweird.f32 %v366
      %v372 = vsel %vm371, %v366, %v370
      %v373 = vmul.f32 %v362, %v372
      %v374 = vmul.f32 %v365, %v372
      %v375 = vmul.f32 %v354, %v354
      %v376 = vmul.f32 %v357, %v357
      %v377 = vsel %vm359, %v375, 0.0
      %378 = vadd.xlane.f32.xlu0 %v377
      %v379 = vpop.xlane.xlu0 %378
      %v380 = vsel %vm359, %v376, 0.0
      %381 = vadd.xlane.f32.xlu0 %v380
      %v382 = vpop.xlane.xlu0 %381
      %v383 = vmul.f32 %v379, %v372
      %v384 = vmul.f32 %v382, %v372
      %v385 = vmul.f32 %v373, %v373
      %v386 = vmul.f32 %v374, %v374
      %v387 = vsub.f32 %v383, %v385
      %v388 = vsub.f32 %v384, %v386
      %v389 = vmax.f32 %v387, 0.0
      %v390 = vmax.f32 %v388, 0.0
      %v391 = vsub.f32 %v354, %v373
      %v392 = vsub.f32 %v357, %v374
      %v393 = vadd.f32 %v389, 1e-05
      %v394 = vadd.f32 %v390, 1e-05
      %v395 = vrsqrt.pop %v393
      %v396 = vmul.f32 %v395, %v393
      %v397 = vmul.f32 %v396, %v395
      %v398 = vmul.f32 0.5, %v397
      %v399 = vsub.f32 1.5, %v398
      %v400 = vmul.f32 %v395, %v399
      %vm401 = vweird.f32 %v393
      %vm402 = vweird.f32 %v395
      %vm403 = vmor %vm401, %vm402
      %v404 = vsel %vm403, %v395, %v400
      %v405 = vrsqrt.pop %v394
      %v406 = vmul.f32 %v405, %v394
      %v407 = vmul.f32 %v406, %v405
      %v408 = vmul.f32 0.5, %v407
      %v409 = vsub.f32 1.5, %v408
      %v410 = vmul.f32 %v405, %v409
      %vm411 = vweird.f32 %v394
      %vm412 = vweird.f32 %v405
      %vm413 = vmor %vm411, %vm412
      %v414 = vsel %vm413, %v405, %v410
      %v415 = vmul.f32 %v391, %v404
      %v416 = vmul.f32 %v392, %v414
      %v417 = vld [vmem:[#allocation2] sm:$0xff]
      %v418 = vld [vmem:[#allocation2 + $0x8] sm:$0xff]
      %v419 = vld [vmem:[%s259] sm:$0xff]
      %v420 = vld [vmem:[%s259 + $0x8] sm:$0xff]
      %421 = vxpose.xlu0.b32.start [1/16] %v419, 128
      %422 = vxpose.xlu0.b32.cont [2/16] %v420, 128
      %423 = vxpose.xlu0.b32.cont [3/16] 0.0, 128
      %424 = vxpose.xlu0.b32.cont [4/16] 0.0, 128
      %425 = vxpose.xlu0.b32.cont [5/16] 0.0, 128
      %426 = vxpose.xlu0.b32.cont [6/16] 0.0, 128
      %427 = vxpose.xlu0.b32.cont [7/16] 0.0, 128
      %428 = vxpose.xlu0.b32.cont [8/16] 0.0, 128
      %429 = vxpose.xlu0.b32.cont [9/16] 0.0, 128
      %430 = vxpose.xlu0.b32.cont [10/16] 0.0, 128
      %431 = vxpose.xlu0.b32.cont [11/16] 0.0, 128
      %432 = vxpose.xlu0.b32.cont [12/16] 0.0, 128
      %433 = vxpose.xlu0.b32.cont [13/16] 0.0, 128
      %434 = vxpose.xlu0.b32.cont [14/16] 0.0, 128
      %435 = vxpose.xlu0.b32.cont [15/16] 0.0, 128
      %436 = vxpose.xlu0.b32.end [16/16] 0.0, 128
      %v437 = vpop.trf.xlu0
      %v438 = vpop.trf.xlu0
      %v439 = vpop.trf.xlu0
      %v440 = vpop.trf.xlu0
      %v441 = vpop.trf.xlu0
      %v442 = vpop.trf.xlu0
      %v443 = vpop.trf.xlu0
      %v444 = vpop.trf.xlu0
      %v445 = vpop.trf.xlu0
      %v446 = vpop.trf.xlu0
      %v447 = vpop.trf.xlu0
      %v448 = vpop.trf.xlu0
      %v449 = vpop.trf.xlu0
      %v450 = vpop.trf.xlu0
      %v451 = vpop.trf.xlu0
      %v452 = vpop.trf.xlu0
      %v454 = vsel %vm359, %v437, 0
      %v457 = vsel %vm359, %v438, 0
      %459 = vmatpush.msra.mxu0 0.0
      %460 = vmatpush.msra.mxu0 0.0
      %461 = vmatpush.msra.mxu0 0.0
      %462 = vmatpush.msra.mxu0 0.0
      %463 = vmatpush.msra.mxu0 0.0
      %464 = vmatpush.msra.mxu0 0.0
      %465 = vmatpush.msra.mxu0 0.0
      %466 = vmatpush.msra.mxu0 0.0
      %467 = vmatpush.msra.mxu0 0.0
      %468 = vmatpush.msra.mxu0 0.0
      %469 = vmatpush.msra.mxu0 0.0
      %470 = vmatpush.msra.mxu0 0.0
      %471 = vmatpush.msra.mxu0 0.0
      %472 = vmatpush.msra.mxu0 0.0
      %473 = vmatpush.msra.mxu0 %v416
      %474 = vmatpush.msra.mxu0 %v415
      %475 = vmatmul.f32.gmra.mxu0 %v454
      %v476 = vpop.f32.mrf.mxu0
      %v477 = vadd.f32 0.0, %v476
      %478 = vmatmul.f32.gmra.mxu0 %v457
      %v479 = vpop.f32.mrf.mxu0
      %v480 = vadd.f32 0.0, %v479
      %481 = vdwg.mxu0
      %v482 = vadd.f32 %v417, %v477
      %v483 = vadd.f32 %v418, %v480
      %484 = vst.msk [vmem:[#allocation2] sm:$0xff] %vm359, %v482
      %485 = vst.msk [vmem:[#allocation2 + $0x8] sm:$0xff] %vm359, %v483
      %p486 = scmp.eq.s32.totalorder %s17, 2
      // Predicated region
      $region49: #{tpu_custom_call.1} parent=43 // pred_check
        %p487 = pneg %p486
      $region50: #{tpu_custom_call.1} parent=43 // pred_check_branch
        %489 = sbr.rel (%p487) target = $region52
      $region51: #{tpu_custom_call.1} parent=43 // pred_region
        %v490 = vld [vmem:[#allocation2] sm:$0xff]
        %v491 = vld [vmem:[#allocation2 + $0x8] sm:$0xff]
        %v492 = vmul.f32 %v490, %v491
        %v493 = vsel %vm359, %v492, 0.0
        %494 = vadd.xlane.f32.xlu0 %v493
        %v495 = vpop.xlane.xlu0 %494
        %v496 = vmul.f32 %v495, 0.022097087
        %v497 = vxor.u32 %v496, 2147483648
        %v498 = vmul.f32 %v497, 1.442695
        %v499 = vpow.pop %v498
        %v500 = vadd.f32 %v499, 1.0
        %v501 = vrcp.pop %v500
        %v502 = vmul.f32 %v500, %v501
        %v503 = vsub.f32 1.0, %v502
        %v504 = vmul.f32 %v501, %v503
        %v505 = vadd.f32 %v501, %v504
        %vm506 = vweird.f32 %v500
        %vm507 = vweird.f32 %v501
        %vm508 = vmor %vm506, %vm507
        %v509 = vsel %vm508, %v501, %v505
        %v510 = vand.u32 2147483647, %v500
        %vm511 = vcmp.eq.f32.partialorder %v510, 8.507059e+37
        %v512 = vand.u32 %v500, 2147483648
        %v513 = vor.u32 1.1754944e-38, %v512
        %v514 = vsel %vm511, %v513, %v509
        %v515 = vmul.f32 1.0, %v514
        %vm516 = vcmask 7168
        %517 = vst.msk [vmem:[%s6] sm:$0xff] %vm516, %v515
      $region52: #{tpu_custom_call.1} parent=43 // pred_fallthru
        _
      // Predicated region
      $region53: #{tpu_custom_call.1} parent=43 // pred_check
        %p518 = pneg %p166
      $region54: #{tpu_custom_call.1} parent=43 // pred_check_branch
        %520 = sbr.rel (%p518) target = $region56
      $region55: #{tpu_custom_call.1} parent=43 // pred_region
        _
      $region56: #{tpu_custom_call.1} parent=43 // pred_fallthru
        _
      // Predicated region
      $region57: #{tpu_custom_call.1} parent=43 // pred_check
        %p521 = pneg %p166
      $region58: #{tpu_custom_call.1} parent=43 // pred_check_branch
        %523 = sbr.rel (%p521) target = $region60
      $region59: #{tpu_custom_call.1} parent=43 // pred_region
        _
      $region60: #{tpu_custom_call.1} parent=43 // pred_fallthru
        _
    $region44: #{tpu_custom_call.1} parent=5 // pred_fallthru
      _
    %p524 = scmp.le.s32.totalorder 2, %s12
    // Predicated region
    $region61: #{tpu_custom_call.1} parent=5 // pred_check
      %p525 = pneg %p524
    $region62: #{tpu_custom_call.1} parent=5 // pred_check_branch
      %527 = sbr.rel (%p525) target = $region64
    $region63: #{tpu_custom_call.1} parent=5 // pred_region
      %s528 = ssub.s32 %s12, 2
    $region64: #{tpu_custom_call.1} parent=5 // pred_fallthru
      _
  $region6: #{tpu_custom_call.1} parent=0 // loop_footer
    %s16 = sadd.s32 1, %s12
  $region7: #{tpu_custom_call.1} parent=0 // loop_footer_branch
    %11 = sbr.rel target = $region3
  $region8: #{tpu_custom_call.1} parent=0 // loop_exit
    _

</llo_original>
